<compile_context>
chip_gen: v6e
topology: v6e:2x2x1
jax: 0.10.0
libtpu: 0.0.40
codegen_flags: <defaults>
</compile_context>

<pallas_src>
import functools

import jax
import jax.numpy as jnp
from jax import lax
from jax.experimental import pallas as pl
from jax.experimental.pallas import tpu as pltpu


def _round_up(x, m):
    return (x + m - 1) // m * m


def bow_kernel(ids_ref, table_ref, bias_ref, out_ref, acc_ref, *, tv):
    # ids_ref:   (TB, T)    int32 in VMEM  (batch tile of token ids)
    # table_ref: (TV, E_p)  f32   in VMEM  (vocab tile of embedding table)
    # bias_ref:  (1, E_p)   f32
    # out_ref:   (TB, E_p)  f32   (resident across the vocab/reduction axis)
    # acc_ref:   (TB, E_p)  f32   scratch accumulator
    k = pl.program_id(1)

    @pl.when(k == 0)
    def _():
        acc_ref[...] = jnp.zeros_like(acc_ref)

    ids = ids_ref[...]                                          # (TB, T) int32
    tb, t = ids.shape
    v0 = k * tv                                                 # vocab offset of this tile

    # One-hot counts for this vocab tile:
    #   counts[b, v] = #{ t : ids[b, t] == v0 + v }
    viota = lax.broadcasted_iota(jnp.int32, (tb, t, tv), 2) + v0
    onehot = (ids[:, :, None] == viota).astype(jnp.float32)     # (TB, T, TV)
    counts = jnp.sum(onehot, axis=1)                            # (TB, TV)

    # Bag-of-words sum == counts @ table  -> MXU, no loop-carried dependence.
    acc_ref[...] += jnp.dot(counts, table_ref[...],
                            preferred_element_type=jnp.float32)

    @pl.when(k == pl.num_programs(1) - 1)
    def _():
        out_ref[...] = (acc_ref[...] + bias_ref[...]).astype(out_ref.dtype)


def bow_forward(ids, table, bias):
    """ids: (B, T) int; table: (V, E) f32; bias: (E,) f32 -> (B, E) f32."""
    B, T = ids.shape
    V, E = table.shape

    TV = 128                                        # vocab tile (MXU contraction)
    TB = 128 if B >= 128 else _round_up(max(B, 1), 8)   # sublane-dense batch tile
    B_p = _round_up(B, TB)
    V_p = _round_up(V, TV)
    E_p = _round_up(E, 128)                         # lane-dense output / matmul N

    # Zero-pad: padded vocab rows / embed cols contribute nothing; padded batch
    # rows are sliced off the result.
    ids_p = jnp.zeros((B_p, T), jnp.int32).at[:B, :].set(ids.astype(jnp.int32))
    table_p = jnp.zeros((V_p, E_p), table.dtype).at[:V, :E].set(table)
    bias_p = jnp.zeros((1, E_p), table.dtype).at[0, :E].set(bias)

    grid = (B_p // TB, V_p // TV)

    out_p = pl.pallas_call(
        functools.partial(bow_kernel, tv=TV),
        out_shape=jax.ShapeDtypeStruct((B_p, E_p), table.dtype),
        grid_spec=pltpu.PrefetchScalarGridSpec(
            num_scalar_prefetch=0,
            grid=grid,
            in_specs=[
                # batch tile of token ids (full T as last dim)
                pl.BlockSpec((TB, T), lambda i, k: (i, 0)),
                # vocab tile of the embedding table (never fully resident)
                pl.BlockSpec((TV, E_p), lambda i, k: (k, 0)),
                # bias, broadcast to every tile
                pl.BlockSpec((1, E_p), lambda i, k: (0, 0)),
            ],
            out_specs=pl.BlockSpec((TB, E_p), lambda i, k: (i, 0)),
            scratch_shapes=[pltpu.VMEM((TB, E_p), jnp.float32)],
        ),
        compiler_params=pltpu.CompilerParams(
            dimension_semantics=("parallel", "arbitrary")),
    )(ids_p, table_p, bias_p)

    return out_p[:B, :E]


if __name__ == "__main__":
    key = jax.random.PRNGKey(0)
    k_table, k_ids = jax.random.split(key)

    # Small shapes consistent with the module: vocab=20, embed_dim=32, batch=2, seq=8
    vocab_size, embedding_dim = 20, 32
    B, T = 2, 8

    # Deterministic params: nn.Embedding default init ~ N(0, 1); bias = zeros.
    table = jax.random.normal(k_table, (vocab_size, embedding_dim), dtype=jnp.float32)
    bias = jnp.zeros((embedding_dim,), dtype=jnp.float32)

    ids = jax.random.randint(k_ids, (B, T), 0, vocab_size, dtype=jnp.int32)

    out = bow_forward(ids, table, bias)
    jax.block_until_ready(out)

    # Pure-JAX reference check
    ref = table[ids].sum(axis=1) + bias
    assert out.shape == (B, embedding_dim)
    assert jnp.allclose(out, ref, atol=1e-5, rtol=1e-5), \
        "Pallas BOW output mismatch vs reference"

    print("KERNEL_OK")
</pallas_src>

<mosaic_0001>
module attributes {stable_mosaic.version = 11 : i64} {
  func.func @bow_kernel(%arg0: i32, %arg1: i32, %arg2: memref<8x8xi32, #tpu.memory_space<vmem>>, %arg3: memref<128x128xf32, #tpu.memory_space<vmem>>, %arg4: memref<1x128xf32, #tpu.memory_space<vmem>>, %arg5: memref<8x128xf32, #tpu.memory_space<vmem>>, %arg6: memref<8x128xf32, #tpu.memory_space<vmem>>) attributes {dimension_semantics = [#tpu.dimension_semantics<parallel>, #tpu.dimension_semantics<arbitrary>], iteration_bounds = array<i64: 1, 1>, scalar_prefetch = 0 : i64, scratch_operands = 1 : i64, tpu.core_type = #tpu.core_type<tc>, window_params = [{transform_indices = @transform_0, window_bounds = array<i64: 8, 8>}, {transform_indices = @transform_1, window_bounds = array<i64: 128, 128>}, {pipeline_mode = #tpu.pipeline_mode<synchronous>, transform_indices = @transform_2, window_bounds = array<i64: 1, 128>}, {transform_indices = @transform_3, window_bounds = array<i64: 8, 128>}]} {
    %c0_i32 = arith.constant 0 : i32
    %0 = arith.cmpi eq, %arg1, %c0_i32 : i32
    %1 = arith.extui %0 : i1 to i32
    %c0_i32_0 = arith.constant 0 : i32
    %2 = arith.cmpi ne, %1, %c0_i32_0 : i32
    scf.if %2 {
      %cst_11 = arith.constant 0.000000e+00 : f32
      %22 = vector.broadcast %cst_11 : f32 to vector<8x128xf32>
      %c0_12 = arith.constant 0 : index
      %c0_13 = arith.constant 0 : index
      %23 = vector.load %arg6[%c0_12, %c0_13] : memref<8x128xf32, #tpu.memory_space<vmem>>, vector<8x128xf32>
      tpu.vector_store %arg6[%c0_12, %c0_13], %22 {strides = array<i32>} : memref<8x128xf32, #tpu.memory_space<vmem>>, vector<8x128xf32>,
    } else {
    }
    %c0 = arith.constant 0 : index
    %c0_1 = arith.constant 0 : index
    %3 = vector.load %arg2[%c0, %c0_1] : memref<8x8xi32, #tpu.memory_space<vmem>>, vector<8x8xi32>
    %c128_i32 = arith.constant 128 : i32
    %4 = arith.muli %arg1, %c128_i32 : i32
    %5 = tpu.iota {dimensions = array<i32: 2>} : vector<8x8x128xi32>
    %6 = vector.broadcast %4 : i32 to vector<8x8x128xi32>
    %7 = arith.addi %5, %6 : vector<8x8x128xi32>
    %8 = vector.shape_cast %3 : vector<8x8xi32> to vector<8x8x1xi32>
    %9 = vector.broadcast %8 : vector<8x8x1xi32> to vector<8x8x128xi32>
    %10 = arith.cmpi eq, %9, %7 : vector<8x8x128xi32>
    %11 = arith.extui %10 : vector<8x8x128xi1> to vector<8x8x128xi32>
    %12 = arith.sitofp %11 : vector<8x8x128xi32> to vector<8x8x128xf32>
    %cst = arith.constant dense<0.000000e+00> : vector<8x128xf32>
    %13 = vector.multi_reduction <add>, %12, %cst [1] : vector<8x8x128xf32> to vector<8x128xf32>
    %c0_2 = arith.constant 0 : index
    %c0_3 = arith.constant 0 : index
    %14 = vector.load %arg6[%c0_2, %c0_3] : memref<8x128xf32, #tpu.memory_space<vmem>>, vector<8x128xf32>
    %c0_4 = arith.constant 0 : index
    %c0_5 = arith.constant 0 : index
    %15 = vector.load %arg3[%c0_4, %c0_5] : memref<128x128xf32, #tpu.memory_space<vmem>>, vector<128x128xf32>
    %cst_6 = arith.constant dense<0.000000e+00> : vector<8x128xf32>
    %16 = tpu.matmul %13, %15, %cst_6 {dimension_numbers = #tpu.dot_dimension_numbers<[1], [0], [0], [1], [0, 0, 1, 1], [], []>} : vector<8x128xf32>, vector<128x128xf32>, vector<8x128xf32> -> vector<8x128xf32>
    %17 = arith.addf %14, %16 : vector<8x128xf32>
    %c0_7 = arith.constant 0 : index
    %c0_8 = arith.constant 0 : index
    %18 = vector.load %arg6[%c0_7, %c0_8] : memref<8x128xf32, #tpu.memory_space<vmem>>, vector<8x128xf32>
    tpu.vector_store %arg6[%c0_7, %c0_8], %17 {strides = array<i32>} : memref<8x128xf32, #tpu.memory_space<vmem>>, vector<8x128xf32>,
    %c0_i32_9 = arith.constant 0 : i32
    %19 = arith.cmpi eq, %arg1, %c0_i32_9 : i32
    %20 = arith.extui %19 : i1 to i32
    %c0_i32_10 = arith.constant 0 : i32
    %21 = arith.cmpi ne, %20, %c0_i32_10 : i32
    scf.if %21 {
      %c0_11 = arith.constant 0 : index
      %c0_12 = arith.constant 0 : index
      %22 = vector.load %arg6[%c0_11, %c0_12] : memref<8x128xf32, #tpu.memory_space<vmem>>, vector<8x128xf32>
      %c0_13 = arith.constant 0 : index
      %c0_14 = arith.constant 0 : index
      %23 = vector.load %arg4[%c0_13, %c0_14] : memref<1x128xf32, #tpu.memory_space<vmem>>, vector<1x128xf32>
      %24 = vector.broadcast %23 : vector<1x128xf32> to vector<8x128xf32>
      %25 = arith.addf %22, %24 : vector<8x128xf32>
      %c0_15 = arith.constant 0 : index
      %c0_16 = arith.constant 0 : index
      %26 = vector.load %arg5[%c0_15, %c0_16] : memref<8x128xf32, #tpu.memory_space<vmem>>, vector<8x128xf32>
      tpu.vector_store %arg5[%c0_15, %c0_16], %25 {strides = array<i32>} : memref<8x128xf32, #tpu.memory_space<vmem>>, vector<8x128xf32>,
    } else {
    }
    return
  }
  func.func @transform_0(%arg0: i32, %arg1: i32) -> (i32, i32) {
    %c0_i32 = arith.constant 0 : i32
    %c0_i32_0 = arith.constant 0 : i32
    return %arg0, %c0_i32 : i32, i32
  }
  func.func @transform_1(%arg0: i32, %arg1: i32) -> (i32, i32) {
    %c0_i32 = arith.constant 0 : i32
    %c0_i32_0 = arith.constant 0 : i32
    return %arg1, %c0_i32 : i32, i32
  }
  func.func @transform_2(%arg0: i32, %arg1: i32) -> (i32, i32) {
    %c0_i32 = arith.constant 0 : i32
    %c0_i32_0 = arith.constant 0 : i32
    %c0_i32_1 = arith.constant 0 : i32
    return %c0_i32, %c0_i32_0 : i32, i32
  }
  func.func @transform_3(%arg0: i32, %arg1: i32) -> (i32, i32) {
    %c0_i32 = arith.constant 0 : i32
    %c0_i32_0 = arith.constant 0 : i32
    return %arg0, %c0_i32 : i32, i32
  }
}

</mosaic_0001>

<llo_original>
// kernel: tpu_custom_call.1
$region0: #{tpu_custom_call.1}
  #allocation0 [shape = 'u32[]', space=smem, size = 0x4, offset = 0x4, fixed_abs, tag = 'smem constant byte address 0x4 - core index']
  #allocation1 [shape = 'u32[144,128]{1,0:T(1,128)}', space=vmem, size = 0x12000, scoped, tag = 'internal scratch']
  #allocation2 [shape = 'f32[8,128]{1,0:T(8,128)}', space=vmem, size = 0x1000, scoped, tag = 'scratch operand']
  %s0 = inlined_call_operand.hbm [shape: s32[8,8], index: 0, kind: input, shape index: {}]
  %s1 = inlined_call_operand.hbm [shape: f32[128,128], index: 1, kind: input, shape index: {}]
  %s2 = inlined_call_operand.vmem [shape: f32[1,128], index: 2, kind: input, shape index: {}]
  %s3 = inlined_call_operand.hbm [shape: f32[8,128], index: 3, kind: output, shape index: {}]
  %s4 = sld [smem:[#allocation0]]
  $region38: #{tpu_custom_call.1} parent=0
    _
  %s6 = ssub.s32 1, %s4
  %s7 = scalar_select 0, %s6, %s4
  $region1: #{tpu_custom_call.1} parent=0
    #allocation3 [shape = 'u8[4096]{0}', space=vmem, size = 0x1000, scoped, tag = 'input window, operand 0, single buffered']
    #allocation4 [shape = 's32[1]{0}', space=sflag, size = 0x4, scoped, tag = 'scoped memory for tpu_custom_call.1']
    #allocation5 [shape = 's32[1]{0}', space=sflag, size = 0x4, scoped, tag = 'scoped memory for tpu_custom_call.1']
    #allocation6 [shape = 'u8[65536]{0}', space=vmem, size = 0x10000, scoped, tag = 'input window, operand 1, single buffered']
    #allocation7 [shape = 's32[1]{0}', space=sflag, size = 0x4, scoped, tag = 'scoped memory for tpu_custom_call.1']
    #allocation8 [shape = 'u8[4096]{0}', space=vmem, size = 0x1000, scoped, tag = 'output window, operand 0, single buffered']
    %8 = vsyncpa [#allocation4], 0
    %9 = vsyncpa [#allocation7], 0
    %10 = vsyncpa [#allocation5], 0
    // Predicated region
    $region2: #{tpu_custom_call.1} parent=1 // pred_check
      _
    $region3: #{tpu_custom_call.1} parent=1 // pred_check_branch
      %12 = sbr.rel (0) target = $region5
    $region4: #{tpu_custom_call.1} parent=1 // pred_region
      %s14 = ssub.s32 128, 128
      %15 = vsyncadd [#allocation4], %s14
      %s17 = sshll.u32 [#allocation3], 4
      %s18 = int_to_ptr.vmem [resolvable:$true] %s17
      %20 = dma.hbm_to_vmem [thread:$0]  %s0, 128, %s18, [#allocation4]
    $region5: #{tpu_custom_call.1} parent=1 // pred_fallthru
      _
    // Predicated region
    $region6: #{tpu_custom_call.1} parent=1 // pred_check
      _
    $region7: #{tpu_custom_call.1} parent=1 // pred_check_branch
      %22 = sbr.rel (0) target = $region9
    $region8: #{tpu_custom_call.1} parent=1 // pred_region
      %s24 = ssub.s32 2048, 2048
      %25 = vsyncadd [#allocation7], %s24
      %s26 = sshll.u32 [#allocation6], 4
      %s27 = int_to_ptr.vmem [resolvable:$true] %s26
      %32 = dma.hbm_to_vmem [thread:$0]  %s1, 2048, %s27, [#allocation7], 128, 128, 8
    $region9: #{tpu_custom_call.1} parent=1 // pred_fallthru
      _
    // Predicated region
    $region10: #{tpu_custom_call.1} parent=1 // pred_check
      _
    $region11: #{tpu_custom_call.1} parent=1 // pred_check_branch
      %34 = sbr.rel (0) target = $region13
    $region12: #{tpu_custom_call.1} parent=1 // pred_region
      _
    $region13: #{tpu_custom_call.1} parent=1 // pred_fallthru
      _
    // Predicated region
    $region14: #{tpu_custom_call.1} parent=1 // pred_check
      _
    $region15: #{tpu_custom_call.1} parent=1 // pred_check_branch
      %36 = sbr.rel (0) target = $region17
    $region16: #{tpu_custom_call.1} parent=1 // pred_region
      %37 = dma.done [#allocation4], 128
    $region17: #{tpu_custom_call.1} parent=1 // pred_fallthru
      _
    // Predicated region
    $region18: #{tpu_custom_call.1} parent=1 // pred_check
      _
    $region19: #{tpu_custom_call.1} parent=1 // pred_check_branch
      %39 = sbr.rel (0) target = $region21
    $region20: #{tpu_custom_call.1} parent=1 // pred_region
      %40 = dma.done [#allocation7], 2048
    $region21: #{tpu_custom_call.1} parent=1 // pred_fallthru
      _
    %p41 = scmp.eq.s32.totalorder 0, 0
    // Predicated region
    $region22: #{tpu_custom_call.1} parent=1 // pred_check
      %p42 = pneg %p41
    $region23: #{tpu_custom_call.1} parent=1 // pred_check_branch
      %44 = sbr.rel (%p42) target = $region25
    $region24: #{tpu_custom_call.1} parent=1 // pred_region
      %45 = vst [vmem:[#allocation2] sm:$0xff] 0.0
    $region25: #{tpu_custom_call.1} parent=1 // pred_fallthru
      _
    %v46 = vld [vmem:[#allocation3] sm:$0xff]
    %s47 = smul.u32 0, 128
    %v48 = vlaneseq
    %v49 = vand.u32 %v48, 127
    %v50 = vstv %s47
    %v51 = vadd.s32 %v49, %v50
    %v52 = vlaneseq
    %v53 = vshrl.u32 %v52, 7
    %v54 = vsub.s32 0, %v53
    %v55 = vrot.slane %v46, %v54
    %57 = vbcast.lane.b32.xlu0 %v55, 256
    %v58 = vpop.permute.xlu0 %57
    %v59 = vlaneseq
    %v60 = vshrl.u32 %v59, 7
    %v61 = vsub.s32 1, %v60
    %v62 = vrot.slane %v46, %v61
    %64 = vbcast.lane.b32.xlu0 %v62, 256
    %v65 = vpop.permute.xlu0 %64
    %v66 = vlaneseq
    %v67 = vshrl.u32 %v66, 7
    %v68 = vsub.s32 2, %v67
    %v69 = vrot.slane %v46, %v68
    %71 = vbcast.lane.b32.xlu0 %v69, 256
    %v72 = vpop.permute.xlu0 %71
    %v73 = vlaneseq
    %v74 = vshrl.u32 %v73, 7
    %v75 = vsub.s32 3, %v74
    %v76 = vrot.slane %v46, %v75
    %78 = vbcast.lane.b32.xlu0 %v76, 256
    %v79 = vpop.permute.xlu0 %78
    %v80 = vlaneseq
    %v81 = vshrl.u32 %v80, 7
    %v82 = vsub.s32 4, %v81
    %v83 = vrot.slane %v46, %v82
    %85 = vbcast.lane.b32.xlu0 %v83, 256
    %v86 = vpop.permute.xlu0 %85
    %v87 = vlaneseq
    %v88 = vshrl.u32 %v87, 7
    %v89 = vsub.s32 5, %v88
    %v90 = vrot.slane %v46, %v89
    %92 = vbcast.lane.b32.xlu0 %v90, 256
    %v93 = vpop.permute.xlu0 %92
    %v94 = vlaneseq
    %v95 = vshrl.u32 %v94, 7
    %v96 = vsub.s32 6, %v95
    %v97 = vrot.slane %v46, %v96
    %99 = vbcast.lane.b32.xlu0 %v97, 256
    %v100 = vpop.permute.xlu0 %99
    %v101 = vlaneseq
    %v102 = vshrl.u32 %v101, 7
    %v103 = vsub.s32 7, %v102
    %v104 = vrot.slane %v46, %v103
    %106 = vbcast.lane.b32.xlu0 %v104, 256
    %v107 = vpop.permute.xlu0 %106
    %vm108 = vcmp.eq.s32.totalorder %v58, %v51
    %vm109 = vcmp.eq.s32.totalorder %v65, %v51
    %vm110 = vcmp.eq.s32.totalorder %v72, %v51
    %vm111 = vcmp.eq.s32.totalorder %v79, %v51
    %vm112 = vcmp.eq.s32.totalorder %v86, %v51
    %vm113 = vcmp.eq.s32.totalorder %v93, %v51
    %vm114 = vcmp.eq.s32.totalorder %v100, %v51
    %vm115 = vcmp.eq.s32.totalorder %v107, %v51
    %v116 = vsel %vm108, 1, 0
    %v117 = vsel %vm109, 1, 0
    %v118 = vsel %vm110, 1, 0
    %v119 = vsel %vm111, 1, 0
    %v120 = vsel %vm112, 1, 0
    %v121 = vsel %vm113, 1, 0
    %v122 = vsel %vm114, 1, 0
    %v123 = vsel %vm115, 1, 0
    %v124 = vcvt.s32.f32 %v116
    %v125 = vcvt.s32.f32 %v117
    %v126 = vcvt.s32.f32 %v118
    %v127 = vcvt.s32.f32 %v119
    %v128 = vcvt.s32.f32 %v120
    %v129 = vcvt.s32.f32 %v121
    %v130 = vcvt.s32.f32 %v122
    %v131 = vcvt.s32.f32 %v123
    %v132 = vrot.slane %v124, 4
    %v133 = vadd.f32 %v124, %v132
    %v134 = vrot.slane %v133, 2
    %v135 = vadd.f32 %v133, %v134
    %v136 = vrot.slane %v135, 1
    %v137 = vadd.f32 %v135, %v136
    %v138 = vrot.slane %v125, 4
    %v139 = vadd.f32 %v125, %v138
    %v140 = vrot.slane %v139, 2
    %v141 = vadd.f32 %v139, %v140
    %v142 = vrot.slane %v141, 1
    %v143 = vadd.f32 %v141, %v142
    %v144 = vrot.slane %v126, 4
    %v145 = vadd.f32 %v126, %v144
    %v146 = vrot.slane %v145, 2
    %v147 = vadd.f32 %v145, %v146
    %v148 = vrot.slane %v147, 1
    %v149 = vadd.f32 %v147, %v148
    %v150 = vrot.slane %v127, 4
    %v151 = vadd.f32 %v127, %v150
    %v152 = vrot.slane %v151, 2
    %v153 = vadd.f32 %v151, %v152
    %v154 = vrot.slane %v153, 1
    %v155 = vadd.f32 %v153, %v154
    %v156 = vrot.slane %v128, 4
    %v157 = vadd.f32 %v128, %v156
    %v158 = vrot.slane %v157, 2
    %v159 = vadd.f32 %v157, %v158
    %v160 = vrot.slane %v159, 1
    %v161 = vadd.f32 %v159, %v160
    %v162 = vrot.slane %v129, 4
    %v163 = vadd.f32 %v129, %v162
    %v164 = vrot.slane %v163, 2
    %v165 = vadd.f32 %v163, %v164
    %v166 = vrot.slane %v165, 1
    %v167 = vadd.f32 %v165, %v166
    %v168 = vrot.slane %v130, 4
    %v169 = vadd.f32 %v130, %v168
    %v170 = vrot.slane %v169, 2
    %v171 = vadd.f32 %v169, %v170
    %v172 = vrot.slane %v171, 1
    %v173 = vadd.f32 %v171, %v172
    %v174 = vrot.slane %v131, 4
    %v175 = vadd.f32 %v131, %v174
    %v176 = vrot.slane %v175, 2
    %v177 = vadd.f32 %v175, %v176
    %v178 = vrot.slane %v177, 1
    %v179 = vadd.f32 %v177, %v178
    %v180 = vld [vmem:[#allocation2] sm:$0xff]
    %v181 = vld [vmem:[#allocation6] sm:$0xff]
    %v182 = vld [vmem:[#allocation6 + $0x8] sm:$0xff]
    %v183 = vld [vmem:[#allocation6 + $0x10] sm:$0xff]
    %v184 = vld [vmem:[#allocation6 + $0x18] sm:$0xff]
    %v185 = vld [vmem:[#allocation6 + $0x20] sm:$0xff]
    %v186 = vld [vmem:[#allocation6 + $0x28] sm:$0xff]
    %v187 = vld [vmem:[#allocation6 + $0x30] sm:$0xff]
    %v188 = vld [vmem:[#allocation6 + $0x38] sm:$0xff]
    %v189 = vld [vmem:[#allocation6 + $0x40] sm:$0xff]
    %v190 = vld [vmem:[#allocation6 + $0x48] sm:$0xff]
    %v191 = vld [vmem:[#allocation6 + $0x50] sm:$0xff]
    %v192 = vld [vmem:[#allocation6 + $0x58] sm:$0xff]
    %v193 = vld [vmem:[#allocation6 + $0x60] sm:$0xff]
    %v194 = vld [vmem:[#allocation6 + $0x68] sm:$0xff]
    %v195 = vld [vmem:[#allocation6 + $0x70] sm:$0xff]
    %v196 = vld [vmem:[#allocation6 + $0x78] sm:$0xff]
    %vm205 = vcmask 1041409
    %v206 = vsel %vm205, %v143, %v137
    %vm207 = vcmask 1042434
    %v208 = vsel %vm207, %v149, %v206
    %vm209 = vcmask 1043459
    %v210 = vsel %vm209, %v155, %v208
    %vm211 = vcmask 1044484
    %v212 = vsel %vm211, %v161, %v210
    %vm213 = vcmask 1045509
    %v214 = vsel %vm213, %v167, %v212
    %vm215 = vcmask 1046534
    %v216 = vsel %vm215, %v173, %v214
    %vm217 = vcmask 1047559
    %v218 = vsel %vm217, %v179, %v216
    %220 = vmatprep.subr.mxu0 0.0
    %221 = vmatpush1.msra.mxu0 %v196
    %222 = vmatprep.subr.mxu0 0.0
    %223 = vmatpush1.msra.mxu0 %v195
    %224 = vmatprep.subr.mxu0 0.0
    %225 = vmatpush1.msra.mxu0 %v194
    %226 = vmatprep.subr.mxu0 0.0
    %227 = vmatpush1.msra.mxu0 %v193
    %228 = vmatprep.subr.mxu0 0.0
    %229 = vmatpush1.msra.mxu0 %v192
    %230 = vmatprep.subr.mxu0 0.0
    %231 = vmatpush1.msra.mxu0 %v191
    %232 = vmatprep.subr.mxu0 0.0
    %233 = vmatpush1.msra.mxu0 %v190
    %234 = vmatprep.subr.mxu0 0.0
    %235 = vmatpush1.msra.mxu0 %v189
    %236 = vmatprep.subr.mxu0 0.0
    %237 = vmatpush1.msra.mxu0 %v188
    %238 = vmatprep.subr.mxu0 0.0
    %239 = vmatpush1.msra.mxu0 %v187
    %240 = vmatprep.subr.mxu0 0.0
    %241 = vmatpush1.msra.mxu0 %v186
    %242 = vmatprep.subr.mxu0 0.0
    %243 = vmatpush1.msra.mxu0 %v185
    %244 = vmatprep.subr.mxu0 0.0
    %245 = vmatpush1.msra.mxu0 %v184
    %246 = vmatprep.subr.mxu0 0.0
    %247 = vmatpush1.msra.mxu0 %v183
    %248 = vmatprep.subr.mxu0 0.0
    %249 = vmatpush1.msra.mxu0 %v182
    %250 = vmatprep.subr.mxu0 0.0
    %251 = vmatpush1.msra.mxu0 %v181
    %252 = vmatprep.subr.mxu0 0.0
    %253 = vmatpush2.msra.mxu0 0.0
    %254 = vmatprep.subr.mxu0 0.0
    %255 = vmatpush2.msra.mxu0 0.0
    %256 = vmatprep.subr.mxu0 0.0
    %257 = vmatpush2.msra.mxu0 0.0
    %258 = vmatprep.subr.mxu0 0.0
    %259 = vmatpush2.msra.mxu0 0.0
    %260 = vmatprep.subr.mxu0 0.0
    %261 = vmatpush2.msra.mxu0 0.0
    %262 = vmatprep.subr.mxu0 0.0
    %263 = vmatpush2.msra.mxu0 0.0
    %264 = vmatprep.subr.mxu0 0.0
    %265 = vmatpush2.msra.mxu0 0.0
    %266 = vmatprep.subr.mxu0 0.0
    %267 = vmatpush2.msra.mxu0 0.0
    %268 = vmatprep.subr.mxu0 0.0
    %269 = vmatpush2.msra.mxu0 0.0
    %270 = vmatprep.subr.mxu0 0.0
    %271 = vmatpush2.msra.mxu0 0.0
    %272 = vmatprep.subr.mxu0 0.0
    %273 = vmatpush2.msra.mxu0 0.0
    %274 = vmatprep.subr.mxu0 0.0
    %275 = vmatpush2.msra.mxu0 0.0
    %276 = vmatprep.subr.mxu0 0.0
    %277 = vmatpush2.msra.mxu0 0.0
    %278 = vmatprep.subr.mxu0 0.0
    %279 = vmatpush2.msra.mxu0 0.0
    %280 = vmatprep.subr.mxu0 0.0
    %281 = vmatpush2.msra.mxu0 0.0
    %282 = vmatprep.subr.mxu0 0.0
    %283 = vmatpush2.msra.mxu0 0.0
    %284 = vmatprep.mubr.f32.mxu0 0.0
    %285 = vmatmul.mubr.f32.gmra.mxu0 %v218
    %v286 = vpop.f32.mrf.mxu0
    %v287 = vadd.f32 0.0, %v286
    %v288 = vpop.f32.mrf.mxu0
    %289 = vdwg.mxu0
    %v290 = vadd.f32 %v180, %v287
    %291 = vst [vmem:[#allocation2] sm:$0xff] %v290
    // Predicated region
    $region26: #{tpu_custom_call.1} parent=1 // pred_check
      %p292 = pneg %p41
    $region27: #{tpu_custom_call.1} parent=1 // pred_check_branch
      %294 = sbr.rel (%p292) target = $region29
    $region28: #{tpu_custom_call.1} parent=1 // pred_region
      %v295 = vld [vmem:[#allocation2] sm:$0xff]
      %v296 = vld [vmem:[%s2] sm:$0x1]
      %v298 = vlaneseq
      %v299 = vshrl.u32 %v298, 7
      %v300 = vsub.s32 0, %v299
      %v301 = vrot.slane %v296, %v300
      %v303 = vadd.f32 %v295, %v301
      %304 = vst [vmem:[#allocation8] sm:$0xff] %v303
    $region29: #{tpu_custom_call.1} parent=1 // pred_fallthru
      _
    // Predicated region
    $region30: #{tpu_custom_call.1} parent=1 // pred_check
      _
    $region31: #{tpu_custom_call.1} parent=1 // pred_check_branch
      %306 = sbr.rel (0) target = $region33
    $region32: #{tpu_custom_call.1} parent=1 // pred_region
      %s308 = ssub.s32 128, 128
      %309 = vsyncadd [#allocation5], %s308
      %s311 = sshll.u32 [#allocation8], 4
      %s312 = int_to_ptr.vmem [resolvable:$true] %s311
      %314 = dma.vmem_to_hbm [thread:$0]  %s312, 128, %s3, [#allocation5]
    $region33: #{tpu_custom_call.1} parent=1 // pred_fallthru
      _
    // Predicated region
    $region34: #{tpu_custom_call.1} parent=1 // pred_check
      _
    $region35: #{tpu_custom_call.1} parent=1 // pred_check_branch
      %316 = sbr.rel (0) target = $region37
    $region36: #{tpu_custom_call.1} parent=1 // pred_region
      %317 = dma.done [#allocation5], 128
    $region37: #{tpu_custom_call.1} parent=1 // pred_fallthru
      _
    %318 = vsyncpa [#allocation4], 1
    %319 = vsyncpa [#allocation7], 1
    %320 = vsyncpa [#allocation5], 1

</llo_original>
